<compile_context>
chip_gen: v6e
topology: v6e:2x2x1
jax: 0.10.0
libtpu: 0.0.40
codegen_flags: <defaults>
</compile_context>

<pallas_src>
import functools
import math

import jax
import jax.numpy as jnp
from jax.experimental import pallas as pl
from jax.experimental.pallas import tpu as pltpu

BF16 = jnp.bfloat16
F32 = jnp.float32
VMEM_LIMIT = 32 * 1024 * 1024  # explicit scoped-VMEM limit (safe on v5e/v6e/v7x)


def _round_up(x, m):
    return (x + m - 1) // m * m


def _lcm(a, b):
    return a * b // math.gcd(a, b)


def _dot(a, b):
    # MXU matmul with f32 accumulation (operands are bf16 at every call site).
    return jnp.dot(a, b, preferred_element_type=jnp.float32)


def _const_spec(shape):
    return pl.BlockSpec(shape, lambda *idx, s=shape: (0,) * len(s))


def _pick_row_tile(m, group, target):
    # Row tile must be a multiple of lcm(group, 8): sublane alignment + the
    # block-diagonal L_tilde application must cover whole graph groups.
    unit = _lcm(group, 8)
    tm = max(unit, (min(target, max(m, 1)) // unit) * unit)
    mp = _round_up(max(m, 1), tm)
    return tm, mp


# ---------- fused pre_processing MLP + GCN linear + L_tilde propagation ----------

def _branch_kernel(*refs, has_proj):
    if has_proj:
        (x_ref, w1_ref, b1_ref, w2_ref, b2_ref, weff_ref, lbig_ref,
         wp_ref, bp_ref, o_ref) = refs
    else:
        (x_ref, w1_ref, b1_ref, w2_ref, b2_ref, weff_ref, lbig_ref, o_ref) = refs

    h1 = jnp.maximum(_dot(x_ref[...], w1_ref[...]) + b1_ref[...], 0.0)
    h2 = jnp.maximum(_dot(h1.astype(BF16), w2_ref[...]) + b2_ref[...], 0.0)
    # pre_processing last layer (bias=False) folded with my_gcn.lin: W_eff = w3 @ w_gcn
    xe = _dot(h2.astype(BF16), weff_ref[...])
    # graph propagation sigmoid(L_tilde @ x_emb): block-diagonal (tm, tm) matmul
    xg = jax.nn.sigmoid(_dot(lbig_ref[...], xe.astype(BF16)))
    if has_proj:
        # past branch: LSTM input projection (x @ Wx4 + b4) hoisted out of the recurrence
        o_ref[...] = (_dot(xg.astype(BF16), wp_ref[...]) + bp_ref[...]).astype(o_ref.dtype)
    else:
        o_ref[...] = xg.astype(o_ref.dtype)


def fused_branch(x_rows, w1, b1, w2, b2, w_eff, l_group, wproj=None, bproj=None,
                 tm_target=256):
    """x_rows: (M, Fin) bf16 with every `group` consecutive rows forming one graph.

    Returns bf16 (M, 4H) [past, with projection] or (M, out_gnn) [future]."""
    m, fin = x_rows.shape
    group = l_group.shape[0]
    h1d, h2d = w1.shape[1], w2.shape[1]
    wmid = w_eff.shape[1]
    has_proj = wproj is not None
    out_w = wproj.shape[1] if has_proj else wmid

    tm, mp = _pick_row_tile(m, group, tm_target)
    xp = jnp.pad(x_rows, ((0, mp - m), (0, 0))) if mp != m else x_rows
    l_big = jnp.kron(jnp.eye(tm // group, dtype=F32), l_group.astype(F32)).astype(BF16)

    in_specs = [pl.BlockSpec((tm, fin), lambda i: (i, 0)),
                _const_spec((fin, h1d)), _const_spec((1, h1d)),
                _const_spec((h1d, h2d)), _const_spec((1, h2d)),
                _const_spec((h2d, wmid)), _const_spec((tm, tm))]
    args = [xp, w1.astype(BF16), b1, w2.astype(BF16), b2, w_eff.astype(BF16), l_big]
    if has_proj:
        in_specs += [_const_spec((wmid, out_w)), _const_spec((1, out_w))]
        args += [wproj.astype(BF16), bproj]

    flops = 2 * mp * (fin * h1d + h1d * h2d + h2d * wmid + tm * wmid
                      + (wmid * out_w if has_proj else 0))
    bytes_acc = 2 * mp * (fin + out_w) + 2 * (fin * h1d + h1d * h2d + h2d * wmid + tm * tm)
    cost = pl.CostEstimate(flops=int(flops), transcendentals=int(mp * wmid),
                           bytes_accessed=int(bytes_acc))

    out = pl.pallas_call(
        functools.partial(_branch_kernel, has_proj=has_proj),
        out_shape=jax.ShapeDtypeStruct((mp, out_w), BF16),
        grid=(mp // tm,),
        in_specs=in_specs,
        out_specs=pl.BlockSpec((tm, out_w), lambda i: (i, 0)),
        compiler_params=pltpu.CompilerParams(
            dimension_semantics=("parallel",), vmem_limit_bytes=VMEM_LIMIT),
        cost_estimate=cost,
    )(*args)
    return out[:m]


# ---------------- LSTM recurrence: rows "parallel", time "arbitrary" ----------------

def _lstm_kernel(zx_ref, wh_ref, h_out_ref, h_sc, c_sc, *, hidden):
    t = pl.program_id(1)

    @pl.when(t == 0)
    def _():
        h_sc[...] = jnp.zeros_like(h_sc)
        c_sc[...] = jnp.zeros_like(c_sc)

    # gate pre-activations: pre-projected input + recurrent matmul; columns [i|f|o|g]
    z = zx_ref[0].astype(F32) + _dot(h_sc[...].astype(BF16), wh_ref[...])
    sig = jax.nn.sigmoid(z[:, :3 * hidden])           # one EUP push for i, f, o
    i_g = sig[:, :hidden]
    f_g = sig[:, hidden:2 * hidden]
    o_g = sig[:, 2 * hidden:]
    g_g = jnp.tanh(z[:, 3 * hidden:])
    c_new = f_g * c_sc[...] + i_g * g_g
    h_new = o_g * jnp.tanh(c_new)
    c_sc[...] = c_new
    h_sc[...] = h_new

    @pl.when(t == pl.num_programs(1) - 1)
    def _():
        h_out_ref[...] = h_new.astype(h_out_ref.dtype)


def lstm_rollout(zx_seq, wh4, hidden, tm_target=256):
    # zx_seq: (T, M, 4H) bf16 pre-projected gate inputs (x @ Wx4 + b4). Returns (M, H) bf16.
    t, m, g4 = zx_seq.shape
    tm = max(8, (min(tm_target, _round_up(m, 8)) // 8) * 8)
    mp = _round_up(m, tm)
    zxp = jnp.pad(zx_seq, ((0, 0), (0, mp - m), (0, 0))) if mp != m else zx_seq

    out = pl.pallas_call(
        functools.partial(_lstm_kernel, hidden=hidden),
        out_shape=jax.ShapeDtypeStruct((mp, hidden), BF16),
        grid=(mp // tm, t),
        in_specs=[pl.BlockSpec((1, tm, g4), lambda i, s: (s, i, 0)),
                  pl.BlockSpec((hidden, g4), lambda i, s: (0, 0))],
        out_specs=pl.BlockSpec((tm, hidden), lambda i, s: (i, 0)),
        scratch_shapes=[pltpu.VMEM((tm, hidden), F32),
                        pltpu.VMEM((tm, hidden), F32)],
        compiler_params=pltpu.CompilerParams(
            dimension_semantics=("parallel", "arbitrary"),
            vmem_limit_bytes=VMEM_LIMIT),
    )(zxp, wh4.astype(BF16))
    return out[:m]


# -------- decoding MLP: split first weight, lane-dense 128-padded output slab --------

def _decode_kernel(h_ref, xf_ref, w1h_ref, w1x_ref, b1_ref,
                   w2_ref, b2_ref, w3_ref, b3_ref, o_ref):
    z1 = jnp.maximum(_dot(h_ref[...], w1h_ref[...])
                     + _dot(xf_ref[...], w1x_ref[...]) + b1_ref[...], 0.0)
    z2 = jnp.maximum(_dot(z1.astype(BF16), w2_ref[...]) + b2_ref[...], 0.0)
    o_ref[...] = _dot(z2.astype(BF16), w3_ref[...]) + b3_ref[...]


def decode_mlp(h, xf, w1, b1, w2, b2, w3, b3, tm_target=256):
    # equivalent to mlp3(concat(h, xf)) without materializing the concat
    m, hl = h.shape
    fx = xf.shape[1]
    hp1, hp2 = w1.shape[1], w2.shape[1]
    fout = w3.shape[1]
    w1h, w1x = w1[:hl], w1[hl:]
    npad = _round_up(max(fout, 128), 128)                 # lane-dense padded output
    w3p = jnp.pad(w3, ((0, 0), (0, npad - fout)))
    b3p = jnp.pad(b3, ((0, 0), (0, npad - fout)))
    tm = max(8, (min(tm_target, _round_up(m, 8)) // 8) * 8)
    mp = _round_up(m, tm)

    def padr(a):
        return jnp.pad(a, ((0, mp - m), (0, 0))) if mp != m else a

    flops = 2 * mp * (hl * hp1 + fx * hp1 + hp1 * hp2 + hp2 * npad)
    bytes_acc = 2 * mp * (hl + fx) + 4 * mp * npad + 2 * (hl + fx + hp1 + hp2) * max(hp1, npad)
    cost = pl.CostEstimate(flops=int(flops), transcendentals=0,
                           bytes_accessed=int(bytes_acc))

    out = pl.pallas_call(
        _decode_kernel,
        out_shape=jax.ShapeDtypeStruct((mp, npad), F32),
        grid=(mp // tm,),
        in_specs=[pl.BlockSpec((tm, hl), lambda i: (i, 0)),
                  pl.BlockSpec((tm, fx), lambda i: (i, 0)),
                  _const_spec((hl, hp1)), _const_spec((fx, hp1)), _const_spec((1, hp1)),
                  _const_spec((hp1, hp2)), _const_spec((1, hp2)),
                  _const_spec((hp2, npad)), _const_spec((1, npad))],
        out_specs=pl.BlockSpec((tm, npad), lambda i: (i, 0)),
        compiler_params=pltpu.CompilerParams(
            dimension_semantics=("parallel",), vmem_limit_bytes=VMEM_LIMIT),
        cost_estimate=cost,
    )(padr(h).astype(BF16), padr(xf).astype(BF16), w1h.astype(BF16), w1x.astype(BF16),
      b1, w2.astype(BF16), b2, w3p.astype(BF16), b3p)
    return out[:m, :fout]


# ----------------------------- parameters -----------------------------------

def init_params(key, cfg):
    keys = iter(jax.random.split(key, 64))

    def w(fi, fo, scale=0.1):
        return scale * jax.random.normal(next(keys), (fi, fo), F32)

    def b(fo, scale=0.01):
        return scale * jax.random.normal(next(keys), (1, fo), F32)

    ncp = len(cfg["categorical_past"])
    ncf = len(cfg["categorical_future"])
    dcp, dcf = cfg["dim_categorical_past"], cfg["dim_categorical_future"]
    in_pre_p = cfg["in_feat_past"] + dcp - ncp
    in_pre_f = cfg["in_feat_fut"] + dcf - ncf
    op, og = cfg["out_preprocess"], cfg["out_gnn"]
    hl, hp = cfg["hidden_lstm"], cfg["hidden_propagation"]
    fut = cfg["future"]

    params = {}
    params["emb_past"] = [0.1 * jax.random.normal(next(keys), (c, dcp), F32)
                          for c in cfg["categorical_past"]]
    params["emb_fut"] = [0.1 * jax.random.normal(next(keys), (c, dcf), F32)
                         for c in cfg["categorical_future"]]
    # pre_processing: Linear(in,128)+ReLU, Linear(128,128)+ReLU, Linear(128,out, bias=False)
    params["pre_past"] = (w(in_pre_p, 128), b(128), w(128, 128), b(128), w(128, op))
    params["pre_fut"] = (w(in_pre_f, 128), b(128), w(128, 128), b(128), w(128, op))
    params["gnn_past_w"] = w(op, og)   # my_gcn.lin (no bias)
    params["gnn_fut_w"] = w(op, og)
    # LSTM gates packed along the output axis, gate order [i | f | o | g]
    # (fresh init, so the order only needs to be internally consistent)
    params["lstm"] = {"wx4": w(og, 4 * hl), "wh4": w(hl, 4 * hl), "b4": b(4 * hl)}
    # decoding: Linear(hl + fut*og, hp)+ReLU, Linear(hp,hp)+ReLU, Linear(hp,fut)
    params["decoding"] = (w(hl + fut * og, hp), b(hp), w(hp, hp), b(hp),
                          w(hp, fut), b(fut))
    return params


# ----------------------------- forward pass ----------------------------------

def gcn_lstm_forward(params, x_past, x_fut, adj, cfg):
    B, P, N, _ = x_past.shape
    F = cfg["future"]
    ncp = len(cfg["categorical_past"])
    ncf = len(cfg["categorical_future"])
    og = params["gnn_past_w"].shape[1]
    hl = params["lstm"]["wh4"].shape[0]

    # embeddings: sum of per-column lookups (data-dependent gathers kept in JAX)
    idx_p = x_past[..., -ncp:].astype(jnp.int32)
    emb_p = sum(params["emb_past"][i][idx_p[..., i]] for i in range(ncp))
    xp = jnp.concatenate([x_past[..., :-ncp], emb_p], axis=-1)

    idx_f = x_fut[..., -ncf:].astype(jnp.int32)
    emb_f = sum(params["emb_fut"][i][idx_f[..., i]] for i in range(ncf))
    xf = jnp.concatenate([x_fut[..., :-ncf], emb_f], axis=-1)

    # canonical bf16 layouts so every inter-kernel hand-off is a free reshape:
    #   past rows (p, b, n)  -> LSTM consumes (P, B*N, 4H) slabs directly
    #   future rows (b, n, f) -> decode consumes (B*N, F*og) directly
    xp_rows = jnp.transpose(xp.astype(BF16), (1, 0, 2, 3)).reshape(P * B * N, -1)
    xf_rows = jnp.transpose(xf.astype(BF16), (0, 2, 1, 3)).reshape(B * N * F, -1)

    # normalized graph operator L_tilde = I - D~ A D~  (tiny NxN setup, plain JAX)
    d = (jnp.sum(adj, -1) + 1.0) ** -0.5
    l_tilde = jnp.eye(N, dtype=F32) - d[:, None] * adj * d[None, :]
    # future rows are ordered (n, f) inside each batch group -> propagate with kron(L, I_F)
    l_fut = jnp.kron(l_tilde, jnp.eye(F, dtype=F32))

    # fused pre_processing + GCN (+ hoisted LSTM input projection for the past branch)
    # TODO(synk): nn.Dropout treated as identity (inference semantics)
    w1p, b1p, w2p, b2p, w3p_ = params["pre_past"]
    w1f, b1f, w2f, b2f, w3f_ = params["pre_fut"]
    weff_p = w3p_ @ params["gnn_past_w"]     # fold last no-bias linear with gcn lin
    weff_f = w3f_ @ params["gnn_fut_w"]
    lstm_p = params["lstm"]

    zx = fused_branch(xp_rows, w1p, b1p, w2p, b2p, weff_p, l_tilde,
                      wproj=lstm_p["wx4"], bproj=lstm_p["b4"])       # (P*B*N, 4H) bf16
    xf_g = fused_branch(xf_rows, w1f, b1f, w2f, b2f, weff_f, l_fut)  # (B*N*F, og) bf16

    # LSTM over the past sequence (input projection already folded into zx)
    zx_seq = zx.reshape(P, B * N, 4 * hl)                            # free reshape
    h = lstm_rollout(zx_seq, lstm_p["wh4"], hl)                      # (B*N, hl) bf16

    # decoding: h and flattened future GCN features feed a split-weight MLP
    xf_flat = xf_g.reshape(B * N, F * og)                            # free reshape
    out = decode_mlp(h, xf_flat, *params["decoding"])                # (B*N, F) f32
    return out.reshape(B, N, F)


# --------------------------------- main ---------------------------------------

if __name__ == "__main__":
    cfg = dict(
        B=2, N=8, past=4, future=3,
        in_feat_past=6, in_feat_fut=4,
        categorical_past=[5, 7], categorical_future=[4],
        dim_categorical_past=16, dim_categorical_future=8,
        out_preprocess=32, out_gnn=32,
        hidden_lstm=32, hidden_propagation=32,
    )
    key = jax.random.PRNGKey(0)
    k_xp, k_xf, k_adj, k_par = jax.random.split(key, 4)
    params = init_params(k_par, cfg)

    B, N, P, F = cfg["B"], cfg["N"], cfg["past"], cfg["future"]
    ncp, ncf = len(cfg["categorical_past"]), len(cfg["categorical_future"])

    cont_p = jax.random.normal(k_xp, (B, P, N, cfg["in_feat_past"] - ncp), F32)
    cat_p = jax.random.randint(jax.random.fold_in(k_xp, 1), (B, P, N, ncp), 0,
                               jnp.array(cfg["categorical_past"])).astype(F32)
    x_past = jnp.concatenate([cont_p, cat_p], axis=-1)

    cont_f = jax.random.normal(k_xf, (B, F, N, cfg["in_feat_fut"] - ncf), F32)
    cat_f = jax.random.randint(jax.random.fold_in(k_xf, 1), (B, F, N, ncf), 0,
                               jnp.array(cfg["categorical_future"])).astype(F32)
    x_fut = jnp.concatenate([cont_f, cat_f], axis=-1)

    a = (jax.random.uniform(k_adj, (N, N)) < 0.4).astype(F32)
    a = jnp.triu(a, 1)
    adj = a + a.T

    out = gcn_lstm_forward(params, x_past, x_fut, adj, cfg)
    out = jax.block_until_ready(out)
    assert out.shape == (B, N, F), out.shape
    assert bool(jnp.all(jnp.isfinite(out)))
    print("KERNEL_OK")
</pallas_src>

<mosaic_0001>
module attributes {stable_mosaic.version = 11 : i64} {
  func.func @_branch_kernel(%arg0: i32, %arg1: memref<64x20xbf16, #tpu.memory_space<vmem>>, %arg2: memref<20x128xbf16, #tpu.memory_space<vmem>>, %arg3: memref<1x128xf32, #tpu.memory_space<vmem>>, %arg4: memref<128x128xbf16, #tpu.memory_space<vmem>>, %arg5: memref<1x128xf32, #tpu.memory_space<vmem>>, %arg6: memref<128x32xbf16, #tpu.memory_space<vmem>>, %arg7: memref<64x64xbf16, #tpu.memory_space<vmem>>, %arg8: memref<32x128xbf16, #tpu.memory_space<vmem>>, %arg9: memref<1x128xf32, #tpu.memory_space<vmem>>, %arg10: memref<64x128xbf16, #tpu.memory_space<vmem>>) attributes {dimension_semantics = [#tpu.dimension_semantics<parallel>], iteration_bounds = array<i64: 1>, scalar_prefetch = 0 : i64, scratch_operands = 0 : i64, tpu.core_type = #tpu.core_type<tc>, window_params = [{transform_indices = @transform_0, window_bounds = array<i64: 64, 20>}, {pipeline_mode = #tpu.pipeline_mode<synchronous>, transform_indices = @transform_1, window_bounds = array<i64: 20, 128>}, {pipeline_mode = #tpu.pipeline_mode<synchronous>, transform_indices = @transform_2, window_bounds = array<i64: 1, 128>}, {pipeline_mode = #tpu.pipeline_mode<synchronous>, transform_indices = @transform_3, window_bounds = array<i64: 128, 128>}, {pipeline_mode = #tpu.pipeline_mode<synchronous>, transform_indices = @transform_4, window_bounds = array<i64: 1, 128>}, {pipeline_mode = #tpu.pipeline_mode<synchronous>, transform_indices = @transform_5, window_bounds = array<i64: 128, 32>}, {pipeline_mode = #tpu.pipeline_mode<synchronous>, transform_indices = @transform_6, window_bounds = array<i64: 64, 64>}, {pipeline_mode = #tpu.pipeline_mode<synchronous>, transform_indices = @transform_7, window_bounds = array<i64: 32, 128>}, {pipeline_mode = #tpu.pipeline_mode<synchronous>, transform_indices = @transform_8, window_bounds = array<i64: 1, 128>}, {transform_indices = @transform_9, window_bounds = array<i64: 64, 128>}]} {
    %c0 = arith.constant 0 : index
    %c0_0 = arith.constant 0 : index
    %0 = vector.load %arg1[%c0, %c0_0] : memref<64x20xbf16, #tpu.memory_space<vmem>>, vector<64x20xbf16>
    %c0_1 = arith.constant 0 : index
    %c0_2 = arith.constant 0 : index
    %1 = vector.load %arg2[%c0_1, %c0_2] : memref<20x128xbf16, #tpu.memory_space<vmem>>, vector<20x128xbf16>
    %cst = arith.constant dense<0.000000e+00> : vector<64x128xf32>
    %2 = tpu.matmul %0, %1, %cst {dimension_numbers = #tpu.dot_dimension_numbers<[1], [0], [0], [1], [0, 0, 1, 1], [], []>} : vector<64x20xbf16>, vector<20x128xbf16>, vector<64x128xf32> -> vector<64x128xf32>
    %c0_3 = arith.constant 0 : index
    %c0_4 = arith.constant 0 : index
    %3 = vector.load %arg3[%c0_3, %c0_4] : memref<1x128xf32, #tpu.memory_space<vmem>>, vector<1x128xf32>
    %4 = vector.broadcast %3 : vector<1x128xf32> to vector<64x128xf32>
    %5 = arith.addf %2, %4 : vector<64x128xf32>
    %cst_5 = arith.constant 0.000000e+00 : f32
    %6 = vector.broadcast %cst_5 : f32 to vector<64x128xf32>
    %7 = arith.maximumf %5, %6 : vector<64x128xf32>
    %8 = arith.truncf %7 : vector<64x128xf32> to vector<64x128xbf16>
    %c0_6 = arith.constant 0 : index
    %c0_7 = arith.constant 0 : index
    %9 = vector.load %arg4[%c0_6, %c0_7] : memref<128x128xbf16, #tpu.memory_space<vmem>>, vector<128x128xbf16>
    %cst_8 = arith.constant dense<0.000000e+00> : vector<64x128xf32>
    %10 = tpu.matmul %8, %9, %cst_8 {dimension_numbers = #tpu.dot_dimension_numbers<[1], [0], [0], [1], [0, 0, 1, 1], [], []>} : vector<64x128xbf16>, vector<128x128xbf16>, vector<64x128xf32> -> vector<64x128xf32>
    %c0_9 = arith.constant 0 : index
    %c0_10 = arith.constant 0 : index
    %11 = vector.load %arg5[%c0_9, %c0_10] : memref<1x128xf32, #tpu.memory_space<vmem>>, vector<1x128xf32>
    %12 = vector.broadcast %11 : vector<1x128xf32> to vector<64x128xf32>
    %13 = arith.addf %10, %12 : vector<64x128xf32>
    %cst_11 = arith.constant 0.000000e+00 : f32
    %14 = vector.broadcast %cst_11 : f32 to vector<64x128xf32>
    %15 = arith.maximumf %13, %14 : vector<64x128xf32>
    %16 = arith.truncf %15 : vector<64x128xf32> to vector<64x128xbf16>
    %c0_12 = arith.constant 0 : index
    %c0_13 = arith.constant 0 : index
    %17 = vector.load %arg6[%c0_12, %c0_13] : memref<128x32xbf16, #tpu.memory_space<vmem>>, vector<128x32xbf16>
    %cst_14 = arith.constant dense<0.000000e+00> : vector<64x32xf32>
    %18 = tpu.matmul %16, %17, %cst_14 {dimension_numbers = #tpu.dot_dimension_numbers<[1], [0], [0], [1], [0, 0, 1, 1], [], []>} : vector<64x128xbf16>, vector<128x32xbf16>, vector<64x32xf32> -> vector<64x32xf32>
    %c0_15 = arith.constant 0 : index
    %c0_16 = arith.constant 0 : index
    %19 = vector.load %arg7[%c0_15, %c0_16] : memref<64x64xbf16, #tpu.memory_space<vmem>>, vector<64x64xbf16>
    %20 = arith.truncf %18 : vector<64x32xf32> to vector<64x32xbf16>
    %cst_17 = arith.constant dense<0.000000e+00> : vector<64x32xf32>
    %21 = tpu.matmul %19, %20, %cst_17 {dimension_numbers = #tpu.dot_dimension_numbers<[1], [0], [0], [1], [0, 0, 1, 1], [], []>} : vector<64x64xbf16>, vector<64x32xbf16>, vector<64x32xf32> -> vector<64x32xf32>
    %22 = arith.negf %21 : vector<64x32xf32>
    %23 = math.exp %22 : vector<64x32xf32>
    %cst_18 = arith.constant 1.000000e+00 : f32
    %24 = vector.broadcast %cst_18 : f32 to vector<64x32xf32>
    %25 = arith.addf %24, %23 : vector<64x32xf32>
    %26 = arith.divf %24, %25 : vector<64x32xf32>
    %27 = arith.truncf %26 : vector<64x32xf32> to vector<64x32xbf16>
    %c0_19 = arith.constant 0 : index
    %c0_20 = arith.constant 0 : index
    %28 = vector.load %arg8[%c0_19, %c0_20] : memref<32x128xbf16, #tpu.memory_space<vmem>>, vector<32x128xbf16>
    %cst_21 = arith.constant dense<0.000000e+00> : vector<64x128xf32>
    %29 = tpu.matmul %27, %28, %cst_21 {dimension_numbers = #tpu.dot_dimension_numbers<[1], [0], [0], [1], [0, 0, 1, 1], [], []>} : vector<64x32xbf16>, vector<32x128xbf16>, vector<64x128xf32> -> vector<64x128xf32>
    %c0_22 = arith.constant 0 : index
    %c0_23 = arith.constant 0 : index
    %30 = vector.load %arg9[%c0_22, %c0_23] : memref<1x128xf32, #tpu.memory_space<vmem>>, vector<1x128xf32>
    %31 = vector.broadcast %30 : vector<1x128xf32> to vector<64x128xf32>
    %32 = arith.addf %29, %31 : vector<64x128xf32>
    %33 = arith.truncf %32 : vector<64x128xf32> to vector<64x128xbf16>
    %c0_24 = arith.constant 0 : index
    %c0_25 = arith.constant 0 : index
    %34 = vector.load %arg10[%c0_24, %c0_25] : memref<64x128xbf16, #tpu.memory_space<vmem>>, vector<64x128xbf16>
    tpu.vector_store %arg10[%c0_24, %c0_25], %33 {strides = array<i32>} : memref<64x128xbf16, #tpu.memory_space<vmem>>, vector<64x128xbf16>,
    return
  }
  func.func @transform_0(%arg0: i32) -> (i32, i32) {
    %c0_i32 = arith.constant 0 : i32
    %c0_i32_0 = arith.constant 0 : i32
    return %arg0, %c0_i32 : i32, i32
  }
  func.func @transform_1(%arg0: i32) -> (i32, i32) {
    %c0_i32 = arith.constant 0 : i32
    %c0_i32_0 = arith.constant 0 : i32
    %c0_i32_1 = arith.constant 0 : i32
    return %c0_i32, %c0_i32_0 : i32, i32
  }
  func.func @transform_2(%arg0: i32) -> (i32, i32) {
    %c0_i32 = arith.constant 0 : i32
    %c0_i32_0 = arith.constant 0 : i32
    %c0_i32_1 = arith.constant 0 : i32
    return %c0_i32, %c0_i32_0 : i32, i32
  }
  func.func @transform_3(%arg0: i32) -> (i32, i32) {
    %c0_i32 = arith.constant 0 : i32
    %c0_i32_0 = arith.constant 0 : i32
    %c0_i32_1 = arith.constant 0 : i32
    return %c0_i32, %c0_i32_0 : i32, i32
  }
  func.func @transform_4(%arg0: i32) -> (i32, i32) {
    %c0_i32 = arith.constant 0 : i32
    %c0_i32_0 = arith.constant 0 : i32
    %c0_i32_1 = arith.constant 0 : i32
    return %c0_i32, %c0_i32_0 : i32, i32
  }
  func.func @transform_5(%arg0: i32) -> (i32, i32) {
    %c0_i32 = arith.constant 0 : i32
    %c0_i32_0 = arith.constant 0 : i32
    %c0_i32_1 = arith.constant 0 : i32
    return %c0_i32, %c0_i32_0 : i32, i32
  }
  func.func @transform_6(%arg0: i32) -> (i32, i32) {
    %c0_i32 = arith.constant 0 : i32
    %c0_i32_0 = arith.constant 0 : i32
    %c0_i32_1 = arith.constant 0 : i32
    return %c0_i32, %c0_i32_0 : i32, i32
  }
  func.func @transform_7(%arg0: i32) -> (i32, i32) {
    %c0_i32 = arith.constant 0 : i32
    %c0_i32_0 = arith.constant 0 : i32
    %c0_i32_1 = arith.constant 0 : i32
    return %c0_i32, %c0_i32_0 : i32, i32
  }
  func.func @transform_8(%arg0: i32) -> (i32, i32) {
    %c0_i32 = arith.constant 0 : i32
    %c0_i32_0 = arith.constant 0 : i32
    %c0_i32_1 = arith.constant 0 : i32
    return %c0_i32, %c0_i32_0 : i32, i32
  }
  func.func @transform_9(%arg0: i32) -> (i32, i32) {
    %c0_i32 = arith.constant 0 : i32
    %c0_i32_0 = arith.constant 0 : i32
    return %arg0, %c0_i32 : i32, i32
  }
}

</mosaic_0001>

<llo_original>
// kernel: tpu_custom_call.1
$region0: #{tpu_custom_call.1}
  #allocation0 [shape = 'u32[]', space=smem, size = 0x4, offset = 0x4, fixed_abs, tag = 'smem constant byte address 0x4 - core index']
  #allocation1 [shape = 'u32[144,128]{1,0:T(1,128)}', space=vmem, size = 0x12000, scoped, tag = 'internal scratch']
  %s0 = inlined_call_operand.vmem [shape: bf16[64,20], index: 0, kind: input, shape index: {}]
  %s1 = inlined_call_operand.hbm [shape: bf16[20,128], index: 1, kind: input, shape index: {}]
  %s2 = inlined_call_operand.vmem [shape: f32[1,128], index: 2, kind: input, shape index: {}]
  %s3 = inlined_call_operand.vmem [shape: bf16[128,128], index: 3, kind: input, shape index: {}]
  %s4 = inlined_call_operand.vmem [shape: f32[1,128], index: 4, kind: input, shape index: {}]
  %s5 = inlined_call_operand.vmem [shape: bf16[128,32], index: 5, kind: input, shape index: {}]
  %s6 = inlined_call_operand.vmem [shape: bf16[64,64], index: 6, kind: input, shape index: {}]
  %s7 = inlined_call_operand.vmem [shape: bf16[32,128], index: 7, kind: input, shape index: {}]
  %s8 = inlined_call_operand.vmem [shape: f32[1,128], index: 8, kind: input, shape index: {}]
  %s9 = inlined_call_operand.hbm [shape: bf16[64,128], index: 9, kind: output, shape index: {}]
  %s10 = sld [smem:[#allocation0]]
  $region50: #{tpu_custom_call.1} parent=0
    _
  %s12 = ssub.s32 1, %s10
  %s13 = scalar_select 0, %s12, %s10
  $region1: #{tpu_custom_call.1} parent=0
    #allocation2 [shape = 'u8[6144]{0}', space=vmem, size = 0x1800, scoped, tag = 'input window, operand 1, single buffered']
    #allocation3 [shape = 's32[1]{0}', space=sflag, size = 0x4, scoped, tag = 'scoped memory for tpu_custom_call.1']
    #allocation4 [shape = 's32[1]{0}', space=sflag, size = 0x4, scoped, tag = 'scoped memory for tpu_custom_call.1']
    #allocation5 [shape = 'u8[16384]{0}', space=vmem, size = 0x4000, scoped, tag = 'output window, operand 0, single buffered']
    %14 = vsyncpa [#allocation3], 0
    %15 = vsyncpa [#allocation4], 0
    // Predicated region
    $region2: #{tpu_custom_call.1} parent=1 // pred_check
      _
    $region3: #{tpu_custom_call.1} parent=1 // pred_check_branch
      %17 = sbr.rel (0) target = $region5
    $region4: #{tpu_custom_call.1} parent=1 // pred_region
      _
    $region5: #{tpu_custom_call.1} parent=1 // pred_fallthru
      _
    // Predicated region
    $region6: #{tpu_custom_call.1} parent=1 // pred_check
      _
    $region7: #{tpu_custom_call.1} parent=1 // pred_check_branch
      %19 = sbr.rel (0) target = $region9
    $region8: #{tpu_custom_call.1} parent=1 // pred_region
      %s21 = ssub.s32 192, 192
      %22 = vsyncadd [#allocation3], %s21
      %s23 = sshll.u32 [#allocation2], 4
      %s24 = int_to_ptr.vmem [resolvable:$true] %s23
      %29 = dma.hbm_to_vmem [thread:$0]  %s1, 192, %s24, [#allocation3], 64, 64, 4
    $region9: #{tpu_custom_call.1} parent=1 // pred_fallthru
      _
    // Predicated region
    $region10: #{tpu_custom_call.1} parent=1 // pred_check
      _
    $region11: #{tpu_custom_call.1} parent=1 // pred_check_branch
      %31 = sbr.rel (0) target = $region13
    $region12: #{tpu_custom_call.1} parent=1 // pred_region
      _
    $region13: #{tpu_custom_call.1} parent=1 // pred_fallthru
      _
    // Predicated region
    $region14: #{tpu_custom_call.1} parent=1 // pred_check
      _
    $region15: #{tpu_custom_call.1} parent=1 // pred_check_branch
      %33 = sbr.rel (0) target = $region17
    $region16: #{tpu_custom_call.1} parent=1 // pred_region
      _
    $region17: #{tpu_custom_call.1} parent=1 // pred_fallthru
      _
    // Predicated region
    $region18: #{tpu_custom_call.1} parent=1 // pred_check
      _
    $region19: #{tpu_custom_call.1} parent=1 // pred_check_branch
      %35 = sbr.rel (0) target = $region21
    $region20: #{tpu_custom_call.1} parent=1 // pred_region
      _
    $region21: #{tpu_custom_call.1} parent=1 // pred_fallthru
      _
    // Predicated region
    $region22: #{tpu_custom_call.1} parent=1 // pred_check
      _
    $region23: #{tpu_custom_call.1} parent=1 // pred_check_branch
      %37 = sbr.rel (0) target = $region25
    $region24: #{tpu_custom_call.1} parent=1 // pred_region
      _
    $region25: #{tpu_custom_call.1} parent=1 // pred_fallthru
      _
    // Predicated region
    $region26: #{tpu_custom_call.1} parent=1 // pred_check
      _
    $region27: #{tpu_custom_call.1} parent=1 // pred_check_branch
      %39 = sbr.rel (0) target = $region29
    $region28: #{tpu_custom_call.1} parent=1 // pred_region
      _
    $region29: #{tpu_custom_call.1} parent=1 // pred_fallthru
      _
    // Predicated region
    $region30: #{tpu_custom_call.1} parent=1 // pred_check
      _
    $region31: #{tpu_custom_call.1} parent=1 // pred_check_branch
      %41 = sbr.rel (0) target = $region33
    $region32: #{tpu_custom_call.1} parent=1 // pred_region
      _
    $region33: #{tpu_custom_call.1} parent=1 // pred_fallthru
      _
    // Predicated region
    $region34: #{tpu_custom_call.1} parent=1 // pred_check
      _
    $region35: #{tpu_custom_call.1} parent=1 // pred_check_branch
      %43 = sbr.rel (0) target = $region37
    $region36: #{tpu_custom_call.1} parent=1 // pred_region
      _
    $region37: #{tpu_custom_call.1} parent=1 // pred_fallthru
      _
    // Predicated region
    $region38: #{tpu_custom_call.1} parent=1 // pred_check
      _
    $region39: #{tpu_custom_call.1} parent=1 // pred_check_branch
      %45 = sbr.rel (0) target = $region41
    $region40: #{tpu_custom_call.1} parent=1 // pred_region
      %46 = dma.done [#allocation3], 192
    $region41: #{tpu_custom_call.1} parent=1 // pred_fallthru
      _
    %v48 = vld [vmem:[%s0] sm:$0xf]
    %v49 = vld [vmem:[%s0 + $0x4] sm:$0xf]
    %v50 = vld [vmem:[%s0 + $0x8] sm:$0xf]
    %v51 = vld [vmem:[%s0 + $0xc] sm:$0xf]
    %v52 = vld [vmem:[%s0 + $0x10] sm:$0xf]
    %v53 = vld [vmem:[%s0 + $0x14] sm:$0xf]
    %v54 = vld [vmem:[%s0 + $0x18] sm:$0xf]
    %v55 = vld [vmem:[%s0 + $0x1c] sm:$0xf]
    %v56 = vld [vmem:[#allocation2] sm:$0xf]
    %v57 = vld [vmem:[#allocation2 + $0x4] sm:$0xf]
    %v58 = vld [vmem:[#allocation2 + $0x8] sm:$0x3]
    %v59 = vld [vmem:[%s2] sm:$0x1]
    %v61 = vlaneseq
    %v62 = vshrl.u32 %v61, 7
    %v63 = vsub.s32 0, %v62
    %v64 = vrot.slane %v59, %v63
    %v74 = vunpack.c.l.b16 %v48
    %v75 = vunpack.c.l.b16 %v49
    %v76 = vunpack.c.l.b16 %v50
    %v77 = vunpack.c.l.b16 %v51
    %v78 = vunpack.c.l.b16 %v52
    %v79 = vunpack.c.l.b16 %v53
    %v80 = vunpack.c.l.b16 %v54
    %v81 = vunpack.c.l.b16 %v55
    %v82 = vpack.c.b16 %v75, %v74
    %v83 = vpack.c.b16 %v77, %v76
    %v84 = vpack.c.b16 %v79, %v78
    %v85 = vpack.c.b16 %v81, %v80
    %v89 = vunpack.c.l.b16 %v56
    %v90 = vunpack.c.l.b16 %v57
    %v91 = vunpack.c.l.b16 %v58
    %v92 = vpack.c.b16 %v90, %v89
    %v93 = vpack.c.b16 %v91, %v91
    %vm95 = vcmask 162816
    %v97 = vsel %vm95, %v82, 0
    %v100 = vsel %vm95, %v83, 0
    %v103 = vsel %vm95, %v84, 0
    %v106 = vsel %vm95, %v85, 0
    %vm108 = vcmask 1041408
    %v110 = vsel %vm108, %v93, 0
    %112 = vmatprep.subr.bf16.mxu0 0
    %113 = vmatpush1.bf16.msra.mxu0 0
    %114 = vmatprep.subr.bf16.mxu0 0
    %115 = vmatpush1.bf16.msra.mxu0 0
    %116 = vmatprep.subr.bf16.mxu0 0
    %117 = vmatpush1.bf16.msra.mxu0 0
    %118 = vmatprep.subr.bf16.mxu0 0
    %119 = vmatpush1.bf16.msra.mxu0 0
    %120 = vmatprep.subr.bf16.mxu0 0
    %121 = vmatpush1.bf16.msra.mxu0 0
    %122 = vmatprep.subr.bf16.mxu0 0
    %123 = vmatpush1.bf16.msra.mxu0 0
    %124 = vmatprep.subr.bf16.mxu0 0
    %125 = vmatpush1.bf16.msra.mxu0 %v110
    %126 = vmatprep.subr.bf16.mxu0 0
    %127 = vmatpush1.bf16.msra.mxu0 %v92
    %128 = vmatprep.subr.bf16.mxu0 0
    %129 = vmatpush2.bf16.msra.mxu0 0
    %130 = vmatprep.subr.bf16.mxu0 0
    %131 = vmatpush2.bf16.msra.mxu0 0
    %132 = vmatprep.subr.bf16.mxu0 0
    %133 = vmatpush2.bf16.msra.mxu0 0
    %134 = vmatprep.subr.bf16.mxu0 0
    %135 = vmatpush2.bf16.msra.mxu0 0
    %136 = vmatprep.subr.bf16.mxu0 0
    %137 = vmatpush2.bf16.msra.mxu0 0
    %138 = vmatprep.subr.bf16.mxu0 0
    %139 = vmatpush2.bf16.msra.mxu0 0
    %140 = vmatprep.subr.bf16.mxu0 0
    %141 = vmatpush2.bf16.msra.mxu0 0
    %142 = vmatprep.subr.bf16.mxu0 0
    %143 = vmatpush2.bf16.msra.mxu0 0
    %144 = vmatprep.mubr.bf16.mxu0 0
    %145 = vmatmul.mubr.bf16.gmra.mxu0 %v97
    %v146 = vpop.f32.mrf.mxu0
    %v147 = vadd.f32 %v64, %v146
    %v148 = vpop.f32.mrf.mxu0
    %v149 = vpop.f32.mrf.mxu0
    %v150 = vadd.f32 %v64, %v149
    %v151 = vpop.f32.mrf.mxu0
    %152 = vmatprep.mubr.bf16.mxu0 0
    %153 = vmatmul.mubr.bf16.gmra.mxu0 %v100
    %v154 = vpop.f32.mrf.mxu0
    %v155 = vadd.f32 %v64, %v154
    %v156 = vpop.f32.mrf.mxu0
    %v157 = vpop.f32.mrf.mxu0
    %v158 = vadd.f32 %v64, %v157
    %v159 = vpop.f32.mrf.mxu0
    %160 = vmatprep.mubr.bf16.mxu0 0
    %161 = vmatmul.mubr.bf16.gmra.mxu0 %v103
    %v162 = vpop.f32.mrf.mxu0
    %v163 = vadd.f32 %v64, %v162
    %v164 = vpop.f32.mrf.mxu0
    %v165 = vpop.f32.mrf.mxu0
    %v166 = vadd.f32 %v64, %v165
    %v167 = vpop.f32.mrf.mxu0
    %168 = vmatprep.mubr.bf16.mxu0 0
    %169 = vmatmul.mubr.bf16.gmra.mxu0 %v106
    %v170 = vpop.f32.mrf.mxu0
    %v171 = vadd.f32 %v64, %v170
    %v172 = vpop.f32.mrf.mxu0
    %v173 = vpop.f32.mrf.mxu0
    %v174 = vadd.f32 %v64, %v173
    %v175 = vpop.f32.mrf.mxu0
    %176 = vdwg.mxu0
    %v177 = vmax.f32 %v147, 0.0
    %v178 = vmax.f32 %v150, 0.0
    %v179 = vmax.f32 %v155, 0.0
    %v180 = vmax.f32 %v158, 0.0
    %v181 = vmax.f32 %v163, 0.0
    %v182 = vmax.f32 %v166, 0.0
    %v183 = vmax.f32 %v171, 0.0
    %v184 = vmax.f32 %v174, 0.0
    %v185 = vpack.c.bf16 %v178, %v177
    %v186 = vpack.c.bf16 %v180, %v179
    %v187 = vpack.c.bf16 %v182, %v181
    %v188 = vpack.c.bf16 %v184, %v183
    %v189 = vld [vmem:[%s3] sm:$0xf]
    %v190 = vld [vmem:[%s3 + $0x4] sm:$0xf]
    %v191 = vld [vmem:[%s3 + $0x8] sm:$0xf]
    %v192 = vld [vmem:[%s3 + $0xc] sm:$0xf]
    %v193 = vld [vmem:[%s3 + $0x10] sm:$0xf]
    %v194 = vld [vmem:[%s3 + $0x14] sm:$0xf]
    %v195 = vld [vmem:[%s3 + $0x18] sm:$0xf]
    %v196 = vld [vmem:[%s3 + $0x1c] sm:$0xf]
    %v197 = vld [vmem:[%s3 + $0x20] sm:$0xf]
    %v198 = vld [vmem:[%s3 + $0x24] sm:$0xf]
    %v199 = vld [vmem:[%s3 + $0x28] sm:$0xf]
    %v200 = vld [vmem:[%s3 + $0x2c] sm:$0xf]
    %v201 = vld [vmem:[%s3 + $0x30] sm:$0xf]
    %v202 = vld [vmem:[%s3 + $0x34] sm:$0xf]
    %v203 = vld [vmem:[%s3 + $0x38] sm:$0xf]
    %v204 = vld [vmem:[%s3 + $0x3c] sm:$0xf]
    %v205 = vld [vmem:[%s4] sm:$0x1]
    %v207 = vlaneseq
    %v208 = vshrl.u32 %v207, 7
    %v209 = vsub.s32 0, %v208
    %v210 = vrot.slane %v205, %v209
    %v228 = vunpack.c.l.b16 %v189
    %v229 = vunpack.c.l.b16 %v190
    %v230 = vunpack.c.l.b16 %v191
    %v231 = vunpack.c.l.b16 %v192
    %v232 = vunpack.c.l.b16 %v193
    %v233 = vunpack.c.l.b16 %v194
    %v234 = vunpack.c.l.b16 %v195
    %v235 = vunpack.c.l.b16 %v196
    %v236 = vunpack.c.l.b16 %v197
    %v237 = vunpack.c.l.b16 %v198
    %v238 = vunpack.c.l.b16 %v199
    %v239 = vunpack.c.l.b16 %v200
    %v240 = vunpack.c.l.b16 %v201
    %v241 = vunpack.c.l.b16 %v202
    %v242 = vunpack.c.l.b16 %v203
    %v243 = vunpack.c.l.b16 %v204
    %v244 = vpack.c.b16 %v229, %v228
    %v245 = vpack.c.b16 %v231, %v230
    %v246 = vpack.c.b16 %v233, %v232
    %v247 = vpack.c.b16 %v235, %v234
    %v248 = vpack.c.b16 %v237, %v236
    %v249 = vpack.c.b16 %v239, %v238
    %v250 = vpack.c.b16 %v241, %v240
    %v251 = vpack.c.b16 %v243, %v242
    %260 = vmatprep.subr.bf16.mxu0 0
    %261 = vmatpush1.bf16.msra.mxu0 %v251
    %262 = vmatprep.subr.bf16.mxu0 0
    %263 = vmatpush1.bf16.msra.mxu0 %v250
    %264 = vmatprep.subr.bf16.mxu0 0
    %265 = vmatpush1.bf16.msra.mxu0 %v249
    %266 = vmatprep.subr.bf16.mxu0 0
    %267 = vmatpush1.bf16.msra.mxu0 %v248
    %268 = vmatprep.subr.bf16.mxu0 0
    %269 = vmatpush1.bf16.msra.mxu0 %v247
    %270 = vmatprep.subr.bf16.mxu0 0
    %271 = vmatpush1.bf16.msra.mxu0 %v246
    %272 = vmatprep.subr.bf16.mxu0 0
    %273 = vmatpush1.bf16.msra.mxu0 %v245
    %274 = vmatprep.subr.bf16.mxu0 0
    %275 = vmatpush1.bf16.msra.mxu0 %v244
    %276 = vmatprep.subr.bf16.mxu0 0
    %277 = vmatpush2.bf16.msra.mxu0 0
    %278 = vmatprep.subr.bf16.mxu0 0
    %279 = vmatpush2.bf16.msra.mxu0 0
    %280 = vmatprep.subr.bf16.mxu0 0
    %281 = vmatpush2.bf16.msra.mxu0 0
    %282 = vmatprep.subr.bf16.mxu0 0
    %283 = vmatpush2.bf16.msra.mxu0 0
    %284 = vmatprep.subr.bf16.mxu0 0
    %285 = vmatpush2.bf16.msra.mxu0 0
    %286 = vmatprep.subr.bf16.mxu0 0
    %287 = vmatpush2.bf16.msra.mxu0 0
    %288 = vmatprep.subr.bf16.mxu0 0
    %289 = vmatpush2.bf16.msra.mxu0 0
    %290 = vmatprep.subr.bf16.mxu0 0
    %291 = vmatpush2.bf16.msra.mxu0 0
    %292 = vmatprep.mubr.bf16.mxu0 0
    %293 = vmatmul.mubr.bf16.gmra.mxu0 %v185
    %v294 = vpop.f32.mrf.mxu0
    %v295 = vadd.f32 %v210, %v294
    %v296 = vpop.f32.mrf.mxu0
    %v297 = vpop.f32.mrf.mxu0
    %v298 = vadd.f32 %v210, %v297
    %v299 = vpop.f32.mrf.mxu0
    %300 = vmatprep.mubr.bf16.mxu0 0
    %301 = vmatmul.mubr.bf16.gmra.mxu0 %v186
    %v302 = vpop.f32.mrf.mxu0
    %v303 = vadd.f32 %v210, %v302
    %v304 = vpop.f32.mrf.mxu0
    %v305 = vpop.f32.mrf.mxu0
    %v306 = vadd.f32 %v210, %v305
    %v307 = vpop.f32.mrf.mxu0
    %308 = vmatprep.mubr.bf16.mxu0 0
    %309 = vmatmul.mubr.bf16.gmra.mxu0 %v187
    %v310 = vpop.f32.mrf.mxu0
    %v311 = vadd.f32 %v210, %v310
    %v312 = vpop.f32.mrf.mxu0
    %v313 = vpop.f32.mrf.mxu0
    %v314 = vadd.f32 %v210, %v313
    %v315 = vpop.f32.mrf.mxu0
    %316 = vmatprep.mubr.bf16.mxu0 0
    %317 = vmatmul.mubr.bf16.gmra.mxu0 %v188
    %v318 = vpop.f32.mrf.mxu0
    %v319 = vadd.f32 %v210, %v318
    %v320 = vpop.f32.mrf.mxu0
    %v321 = vpop.f32.mrf.mxu0
    %v322 = vadd.f32 %v210, %v321
    %v323 = vpop.f32.mrf.mxu0
    %324 = vdwg.mxu0
    %v325 = vmax.f32 %v295, 0.0
    %v326 = vmax.f32 %v298, 0.0
    %v327 = vmax.f32 %v303, 0.0
    %v328 = vmax.f32 %v306, 0.0
    %v329 = vmax.f32 %v311, 0.0
    %v330 = vmax.f32 %v314, 0.0
    %v331 = vmax.f32 %v319, 0.0
    %v332 = vmax.f32 %v322, 0.0
    %v333 = vpack.c.bf16 %v326, %v325
    %v334 = vpack.c.bf16 %v328, %v327
    %v335 = vpack.c.bf16 %v330, %v329
    %v336 = vpack.c.bf16 %v332, %v331
    %v337 = vld [vmem:[%s5] sm:$0xf]
    %v338 = vld [vmem:[%s5 + $0x4] sm:$0xf]
    %v339 = vld [vmem:[%s5 + $0x8] sm:$0xf]
    %v340 = vld [vmem:[%s5 + $0xc] sm:$0xf]
    %v341 = vld [vmem:[%s5 + $0x10] sm:$0xf]
    %v342 = vld [vmem:[%s5 + $0x14] sm:$0xf]
    %v343 = vld [vmem:[%s5 + $0x18] sm:$0xf]
    %v344 = vld [vmem:[%s5 + $0x1c] sm:$0xf]
    %v345 = vld [vmem:[%s5 + $0x20] sm:$0xf]
    %v346 = vld [vmem:[%s5 + $0x24] sm:$0xf]
    %v347 = vld [vmem:[%s5 + $0x28] sm:$0xf]
    %v348 = vld [vmem:[%s5 + $0x2c] sm:$0xf]
    %v349 = vld [vmem:[%s5 + $0x30] sm:$0xf]
    %v350 = vld [vmem:[%s5 + $0x34] sm:$0xf]
    %v351 = vld [vmem:[%s5 + $0x38] sm:$0xf]
    %v352 = vld [vmem:[%s5 + $0x3c] sm:$0xf]
    %v369 = vunpack.c.l.b16 %v337
    %v370 = vunpack.c.l.b16 %v338
    %v371 = vunpack.c.l.b16 %v339
    %v372 = vunpack.c.l.b16 %v340
    %v373 = vunpack.c.l.b16 %v341
    %v374 = vunpack.c.l.b16 %v342
    %v375 = vunpack.c.l.b16 %v343
    %v376 = vunpack.c.l.b16 %v344
    %v377 = vunpack.c.l.b16 %v345
    %v378 = vunpack.c.l.b16 %v346
    %v379 = vunpack.c.l.b16 %v347
    %v380 = vunpack.c.l.b16 %v348
    %v381 = vunpack.c.l.b16 %v349
    %v382 = vunpack.c.l.b16 %v350
    %v383 = vunpack.c.l.b16 %v351
    %v384 = vunpack.c.l.b16 %v352
    %v385 = vpack.c.b16 %v370, %v369
    %v386 = vpack.c.b16 %v372, %v371
    %v387 = vpack.c.b16 %v374, %v373
    %v388 = vpack.c.b16 %v376, %v375
    %v389 = vpack.c.b16 %v378, %v377
    %v390 = vpack.c.b16 %v380, %v379
    %v391 = vpack.c.b16 %v382, %v381
    %v392 = vpack.c.b16 %v384, %v383
    %401 = vmatprep.subr.bf16.mxu0 0
    %402 = vmatpush1.bf16.msra.mxu0 %v392
    %403 = vmatprep.subr.bf16.mxu0 0
    %404 = vmatpush1.bf16.msra.mxu0 %v391
    %405 = vmatprep.subr.bf16.mxu0 0
    %406 = vmatpush1.bf16.msra.mxu0 %v390
    %407 = vmatprep.subr.bf16.mxu0 0
    %408 = vmatpush1.bf16.msra.mxu0 %v389
    %409 = vmatprep.subr.bf16.mxu0 0
    %410 = vmatpush1.bf16.msra.mxu0 %v388
    %411 = vmatprep.subr.bf16.mxu0 0
    %412 = vmatpush1.bf16.msra.mxu0 %v387
    %413 = vmatprep.subr.bf16.mxu0 0
    %414 = vmatpush1.bf16.msra.mxu0 %v386
    %415 = vmatprep.subr.bf16.mxu0 0
    %416 = vmatpush1.bf16.msra.mxu0 %v385
    %417 = vmatprep.subr.bf16.mxu0 0
    %418 = vmatpush2.bf16.msra.mxu0 0
    %419 = vmatprep.subr.bf16.mxu0 0
    %420 = vmatpush2.bf16.msra.mxu0 0
    %421 = vmatprep.subr.bf16.mxu0 0
    %422 = vmatpush2.bf16.msra.mxu0 0
    %423 = vmatprep.subr.bf16.mxu0 0
    %424 = vmatpush2.bf16.msra.mxu0 0
    %425 = vmatprep.subr.bf16.mxu0 0
    %426 = vmatpush2.bf16.msra.mxu0 0
    %427 = vmatprep.subr.bf16.mxu0 0
    %428 = vmatpush2.bf16.msra.mxu0 0
    %429 = vmatprep.subr.bf16.mxu0 0
    %430 = vmatpush2.bf16.msra.mxu0 0
    %431 = vmatprep.subr.bf16.mxu0 0
    %432 = vmatpush2.bf16.msra.mxu0 0
    %433 = vmatprep.mubr.bf16.mxu0 0
    %434 = vmatmul.mubr.bf16.gmra.mxu0 %v333
    %v435 = vpop.f32.mrf.mxu0
    %v436 = vadd.f32 0.0, %v435
    %v437 = vpop.f32.mrf.mxu0
    %v438 = vpop.f32.mrf.mxu0
    %v439 = vadd.f32 0.0, %v438
    %v440 = vpop.f32.mrf.mxu0
    %441 = vmatprep.mubr.bf16.mxu0 0
    %442 = vmatmul.mubr.bf16.gmra.mxu0 %v334
    %v443 = vpop.f32.mrf.mxu0
    %v444 = vadd.f32 0.0, %v443
    %v445 = vpop.f32.mrf.mxu0
    %v446 = vpop.f32.mrf.mxu0
    %v447 = vadd.f32 0.0, %v446
    %v448 = vpop.f32.mrf.mxu0
    %449 = vmatprep.mubr.bf16.mxu0 0
    %450 = vmatmul.mubr.bf16.gmra.mxu0 %v335
    %v451 = vpop.f32.mrf.mxu0
    %v452 = vadd.f32 0.0, %v451
    %v453 = vpop.f32.mrf.mxu0
    %v454 = vpop.f32.mrf.mxu0
    %v455 = vadd.f32 0.0, %v454
    %v456 = vpop.f32.mrf.mxu0
    %457 = vmatprep.mubr.bf16.mxu0 0
    %458 = vmatmul.mubr.bf16.gmra.mxu0 %v336
    %v459 = vpop.f32.mrf.mxu0
    %v460 = vadd.f32 0.0, %v459
    %v461 = vpop.f32.mrf.mxu0
    %v462 = vpop.f32.mrf.mxu0
    %v463 = vadd.f32 0.0, %v462
    %v464 = vpop.f32.mrf.mxu0
    %465 = vdwg.mxu0
    %v466 = vld [vmem:[%s6] sm:$0xf]
    %v467 = vld [vmem:[%s6 + $0x4] sm:$0xf]
    %v468 = vld [vmem:[%s6 + $0x8] sm:$0xf]
    %v469 = vld [vmem:[%s6 + $0xc] sm:$0xf]
    %v470 = vld [vmem:[%s6 + $0x10] sm:$0xf]
    %v471 = vld [vmem:[%s6 + $0x14] sm:$0xf]
    %v472 = vld [vmem:[%s6 + $0x18] sm:$0xf]
    %v473 = vld [vmem:[%s6 + $0x1c] sm:$0xf]
    %v474 = vpack.c.bf16 %v439, %v436
    %v475 = vpack.c.bf16 %v447, %v444
    %v476 = vpack.c.bf16 %v455, %v452
    %v477 = vpack.c.bf16 %v463, %v460
    %v486 = vunpack.c.l.b16 %v466
    %v487 = vunpack.c.l.b16 %v467
    %v488 = vunpack.c.l.b16 %v468
    %v489 = vunpack.c.l.b16 %v469
    %v490 = vunpack.c.l.b16 %v470
    %v491 = vunpack.c.l.b16 %v471
    %v492 = vunpack.c.l.b16 %v472
    %v493 = vunpack.c.l.b16 %v473
    %v494 = vpack.c.b16 %v487, %v486
    %v495 = vpack.c.b16 %v489, %v488
    %v496 = vpack.c.b16 %v491, %v490
    %v497 = vpack.c.b16 %v493, %v492
    %vm498 = vcmask 523264
    %v500 = vsel %vm498, %v494, 0
    %v503 = vsel %vm498, %v495, 0
    %v506 = vsel %vm498, %v496, 0
    %v509 = vsel %vm498, %v497, 0
    %511 = vmatprep.subr.bf16.mxu0 0
    %512 = vmatpush1.bf16.msra.mxu0 0
    %513 = vmatprep.subr.bf16.mxu0 0
    %514 = vmatpush1.bf16.msra.mxu0 0
    %515 = vmatprep.subr.bf16.mxu0 0
    %516 = vmatpush1.bf16.msra.mxu0 0
    %517 = vmatprep.subr.bf16.mxu0 0
    %518 = vmatpush1.bf16.msra.mxu0 0
    %519 = vmatprep.subr.bf16.mxu0 0
    %520 = vmatpush1.bf16.msra.mxu0 %v477
    %521 = vmatprep.subr.bf16.mxu0 0
    %522 = vmatpush1.bf16.msra.mxu0 %v476
    %523 = vmatprep.subr.bf16.mxu0 0
    %524 = vmatpush1.bf16.msra.mxu0 %v475
    %525 = vmatprep.subr.bf16.mxu0 0
    %526 = vmatpush1.bf16.msra.mxu0 %v474
    %527 = vmatprep.subr.bf16.mxu0 0
    %528 = vmatpush2.bf16.msra.mxu0 0
    %529 = vmatprep.subr.bf16.mxu0 0
    %530 = vmatpush2.bf16.msra.mxu0 0
    %531 = vmatprep.subr.bf16.mxu0 0
    %532 = vmatpush2.bf16.msra.mxu0 0
    %533 = vmatprep.subr.bf16.mxu0 0
    %534 = vmatpush2.bf16.msra.mxu0 0
    %535 = vmatprep.subr.bf16.mxu0 0
    %536 = vmatpush2.bf16.msra.mxu0 0
    %537 = vmatprep.subr.bf16.mxu0 0
    %538 = vmatpush2.bf16.msra.mxu0 0
    %539 = vmatprep.subr.bf16.mxu0 0
    %540 = vmatpush2.bf16.msra.mxu0 0
    %541 = vmatprep.subr.bf16.mxu0 0
    %542 = vmatpush2.bf16.msra.mxu0 0
    %543 = vmatprep.mubr.bf16.mxu0 0
    %544 = vmatmul.mubr.bf16.gmra.mxu0 %v500
    %v545 = vpop.f32.mrf.mxu0
    %v546 = vadd.f32 0.0, %v545
    %v547 = vpop.f32.mrf.mxu0
    %v548 = vpop.f32.mrf.mxu0
    %v549 = vadd.f32 0.0, %v548
    %v550 = vpop.f32.mrf.mxu0
    %551 = vmatprep.mubr.bf16.mxu0 0
    %552 = vmatmul.mubr.bf16.gmra.mxu0 %v503
    %v553 = vpop.f32.mrf.mxu0
    %v554 = vadd.f32 0.0, %v553
    %v555 = vpop.f32.mrf.mxu0
    %v556 = vpop.f32.mrf.mxu0
    %v557 = vadd.f32 0.0, %v556
    %v558 = vpop.f32.mrf.mxu0
    %559 = vmatprep.mubr.bf16.mxu0 0
    %560 = vmatmul.mubr.bf16.gmra.mxu0 %v506
    %v561 = vpop.f32.mrf.mxu0
    %v562 = vadd.f32 0.0, %v561
    %v563 = vpop.f32.mrf.mxu0
    %v564 = vpop.f32.mrf.mxu0
    %v565 = vadd.f32 0.0, %v564
    %v566 = vpop.f32.mrf.mxu0
    %567 = vmatprep.mubr.bf16.mxu0 0
    %568 = vmatmul.mubr.bf16.gmra.mxu0 %v509
    %v569 = vpop.f32.mrf.mxu0
    %v570 = vadd.f32 0.0, %v569
    %v571 = vpop.f32.mrf.mxu0
    %v572 = vpop.f32.mrf.mxu0
    %v573 = vadd.f32 0.0, %v572
    %v574 = vpop.f32.mrf.mxu0
    %575 = vdwg.mxu0
    %v576 = vxor.u32 %v546, 2147483648
    %v577 = vxor.u32 %v549, 2147483648
    %v578 = vxor.u32 %v554, 2147483648
    %v579 = vxor.u32 %v557, 2147483648
    %v580 = vxor.u32 %v562, 2147483648
    %v581 = vxor.u32 %v565, 2147483648
    %v582 = vxor.u32 %v570, 2147483648
    %v583 = vxor.u32 %v573, 2147483648
    %v584 = vmul.f32 %v576, 1.442695
    %v585 = vpow.pop %v584
    %v586 = vmul.f32 %v577, 1.442695
    %v587 = vpow.pop %v586
    %v588 = vmul.f32 %v578, 1.442695
    %v589 = vpow.pop %v588
    %v590 = vmul.f32 %v579, 1.442695
    %v591 = vpow.pop %v590
    %v592 = vmul.f32 %v580, 1.442695
    %v593 = vpow.pop %v592
    %v594 = vmul.f32 %v581, 1.442695
    %v595 = vpow.pop %v594
    %v596 = vmul.f32 %v582, 1.442695
    %v597 = vpow.pop %v596
    %v598 = vmul.f32 %v583, 1.442695
    %v599 = vpow.pop %v598
    %v600 = vadd.f32 %v585, 1.0
    %v601 = vadd.f32 %v587, 1.0
    %v602 = vadd.f32 %v589, 1.0
    %v603 = vadd.f32 %v591, 1.0
    %v604 = vadd.f32 %v593, 1.0
    %v605 = vadd.f32 %v595, 1.0
    %v606 = vadd.f32 %v597, 1.0
    %v607 = vadd.f32 %v599, 1.0
    %v608 = vrcp.pop %v600
    %v609 = vmul.f32 1.0, %v608
    %v610 = vrcp.pop %v601
    %v611 = vmul.f32 1.0, %v610
    %v612 = vrcp.pop %v602
    %v613 = vmul.f32 1.0, %v612
    %v614 = vrcp.pop %v603
    %v615 = vmul.f32 1.0, %v614
    %v616 = vrcp.pop %v604
    %v617 = vmul.f32 1.0, %v616
    %v618 = vrcp.pop %v605
    %v619 = vmul.f32 1.0, %v618
    %v620 = vrcp.pop %v606
    %v621 = vmul.f32 1.0, %v620
    %v622 = vrcp.pop %v607
    %v623 = vmul.f32 1.0, %v622
    %v624 = vpack.c.bf16 %v611, %v609
    %v625 = vpack.c.bf16 %v615, %v613
    %v626 = vpack.c.bf16 %v619, %v617
    %v627 = vpack.c.bf16 %v623, %v621
    %v628 = vld [vmem:[%s7] sm:$0xf]
    %v629 = vld [vmem:[%s7 + $0x4] sm:$0xf]
    %v630 = vld [vmem:[%s7 + $0x8] sm:$0xf]
    %v631 = vld [vmem:[%s7 + $0xc] sm:$0xf]
    %v632 = vld [vmem:[%s8] sm:$0x1]
    %v634 = vlaneseq
    %v635 = vshrl.u32 %v634, 7
    %v636 = vsub.s32 0, %v635
    %v637 = vrot.slane %v632, %v636
    %v643 = vunpack.c.l.b16 %v628
    %v644 = vunpack.c.l.b16 %v629
    %v645 = vunpack.c.l.b16 %v630
    %v646 = vunpack.c.l.b16 %v631
    %v647 = vpack.c.b16 %v644, %v643
    %v648 = vpack.c.b16 %v646, %v645
    %vm651 = vcmask 261120
    %v653 = vsel %vm651, %v624, 0
    %v656 = vsel %vm651, %v625, 0
    %v659 = vsel %vm651, %v626, 0
    %v662 = vsel %vm651, %v627, 0
    %664 = vmatprep.subr.bf16.mxu0 0
    %665 = vmatpush1.bf16.msra.mxu0 0
    %666 = vmatprep.subr.bf16.mxu0 0
    %667 = vmatpush1.bf16.msra.mxu0 0
    %668 = vmatprep.subr.bf16.mxu0 0
    %669 = vmatpush1.bf16.msra.mxu0 0
    %670 = vmatprep.subr.bf16.mxu0 0
    %671 = vmatpush1.bf16.msra.mxu0 0
    %672 = vmatprep.subr.bf16.mxu0 0
    %673 = vmatpush1.bf16.msra.mxu0 0
    %674 = vmatprep.subr.bf16.mxu0 0
    %675 = vmatpush1.bf16.msra.mxu0 0
    %676 = vmatprep.subr.bf16.mxu0 0
    %677 = vmatpush1.bf16.msra.mxu0 %v648
    %678 = vmatprep.subr.bf16.mxu0 0
    %679 = vmatpush1.bf16.msra.mxu0 %v647
    %680 = vmatprep.subr.bf16.mxu0 0
    %681 = vmatpush2.bf16.msra.mxu0 0
    %682 = vmatprep.subr.bf16.mxu0 0
    %683 = vmatpush2.bf16.msra.mxu0 0
    %684 = vmatprep.subr.bf16.mxu0 0
    %685 = vmatpush2.bf16.msra.mxu0 0
    %686 = vmatprep.subr.bf16.mxu0 0
    %687 = vmatpush2.bf16.msra.mxu0 0
    %688 = vmatprep.subr.bf16.mxu0 0
    %689 = vmatpush2.bf16.msra.mxu0 0
    %690 = vmatprep.subr.bf16.mxu0 0
    %691 = vmatpush2.bf16.msra.mxu0 0
    %692 = vmatprep.subr.bf16.mxu0 0
    %693 = vmatpush2.bf16.msra.mxu0 0
    %694 = vmatprep.subr.bf16.mxu0 0
    %695 = vmatpush2.bf16.msra.mxu0 0
    %696 = vmatprep.mubr.bf16.mxu0 0
    %697 = vmatmul.mubr.bf16.gmra.mxu0 %v653
    %v698 = vpop.f32.mrf.mxu0
    %v699 = vadd.f32 %v637, %v698
    %v700 = vpop.f32.mrf.mxu0
    %v701 = vpop.f32.mrf.mxu0
    %v702 = vadd.f32 %v637, %v701
    %v703 = vpop.f32.mrf.mxu0
    %704 = vmatprep.mubr.bf16.mxu0 0
    %705 = vmatmul.mubr.bf16.gmra.mxu0 %v656
    %v706 = vpop.f32.mrf.mxu0
    %v707 = vadd.f32 %v637, %v706
    %v708 = vpop.f32.mrf.mxu0
    %v709 = vpop.f32.mrf.mxu0
    %v710 = vadd.f32 %v637, %v709
    %v711 = vpop.f32.mrf.mxu0
    %712 = vmatprep.mubr.bf16.mxu0 0
    %713 = vmatmul.mubr.bf16.gmra.mxu0 %v659
    %v714 = vpop.f32.mrf.mxu0
    %v715 = vadd.f32 %v637, %v714
    %v716 = vpop.f32.mrf.mxu0
    %v717 = vpop.f32.mrf.mxu0
    %v718 = vadd.f32 %v637, %v717
    %v719 = vpop.f32.mrf.mxu0
    %720 = vmatprep.mubr.bf16.mxu0 0
    %721 = vmatmul.mubr.bf16.gmra.mxu0 %v662
    %v722 = vpop.f32.mrf.mxu0
    %v723 = vadd.f32 %v637, %v722
    %v724 = vpop.f32.mrf.mxu0
    %v725 = vpop.f32.mrf.mxu0
    %v726 = vadd.f32 %v637, %v725
    %v727 = vpop.f32.mrf.mxu0
    %728 = vdwg.mxu0
    %v729 = vpack.c.bf16 %v702, %v699
    %v730 = vpack.c.bf16 %v710, %v707
    %v731 = vpack.c.bf16 %v718, %v715
    %v732 = vpack.c.bf16 %v726, %v723
    %v737 = vunpack.c.l.b16 %v729
    %v738 = vunpack.c.h.b16 %v729
    %v739 = vunpack.c.l.b16 %v730
    %v740 = vunpack.c.h.b16 %v730
    %v741 = vunpack.c.l.b16 %v731
    %v742 = vunpack.c.h.b16 %v731
    %v743 = vunpack.c.l.b16 %v732
    %v744 = vunpack.c.h.b16 %v732
    %v745 = vpack.c.b16 %v737, %v737
    %v746 = vpack.c.b16 %v738, %v738
    %v747 = vpack.c.b16 %v739, %v739
    %v748 = vpack.c.b16 %v740, %v740
    %v749 = vpack.c.b16 %v741, %v741
    %v750 = vpack.c.b16 %v742, %v742
    %v751 = vpack.c.b16 %v743, %v743
    %v752 = vpack.c.b16 %v744, %v744
    %761 = vst [vmem:[#allocation5] sm:$0xf] %v745
    %762 = vst [vmem:[#allocation5 + $0x4] sm:$0xf] %v746
    %763 = vst [vmem:[#allocation5 + $0x8] sm:$0xf] %v747
    %764 = vst [vmem:[#allocation5 + $0xc] sm:$0xf] %v748
    %765 = vst [vmem:[#allocation5 + $0x10] sm:$0xf] %v749
    %766 = vst [vmem:[#allocation5 + $0x14] sm:$0xf] %v750
    %767 = vst [vmem:[#allocation5 + $0x18] sm:$0xf] %v751
    %768 = vst [vmem:[#allocation5 + $0x1c] sm:$0xf] %v752
    // Predicated region
    $region42: #{tpu_custom_call.1} parent=1 // pred_check
      _
    $region43: #{tpu_custom_call.1} parent=1 // pred_check_branch
      %770 = sbr.rel (0) target = $region45
    $region44: #{tpu_custom_call.1} parent=1 // pred_region
      %s772 = ssub.s32 512, 512
      %773 = vsyncadd [#allocation4], %s772
      %s774 = sshll.u32 [#allocation5], 4
      %s775 = int_to_ptr.vmem [resolvable:$true] %s774
      %780 = dma.vmem_to_hbm [thread:$0]  %s775, 512, %s9, [#allocation4], 64, 64, 4
    $region45: #{tpu_custom_call.1} parent=1 // pred_fallthru
      _
    // Predicated region
    $region46: #{tpu_custom_call.1} parent=1 // pred_check
      _
    $region47: #{tpu_custom_call.1} parent=1 // pred_check_branch
      %782 = sbr.rel (0) target = $region49
    $region48: #{tpu_custom_call.1} parent=1 // pred_region
      %783 = dma.done [#allocation4], 512
    $region49: #{tpu_custom_call.1} parent=1 // pred_fallthru
      _
    %784 = vsyncpa [#allocation3], 1
    %785 = vsyncpa [#allocation4], 1

</llo_original>
